<compile_context>
chip_gen: v5e
topology: v5e:2x2
jax: 0.10.0
libtpu: 0.0.40
codegen_flags: <defaults>
</compile_context>

<pallas_src>
import functools
import math

import jax
import jax.numpy as jnp
from jax.experimental import pallas as pl
from jax.experimental.pallas import tpu as pltpu

_SQRT_2_OVER_PI = math.sqrt(2.0 / math.pi)
_C1 = _SQRT_2_OVER_PI                 # sqrt(2/pi)
_C2 = _SQRT_2_OVER_PI * 0.044715      # sqrt(2/pi) * 0.044715

# ~4 MiB blocks: in+out, each double-buffered => ~16 MiB pipelined footprint.
_TARGET_BLOCK_BYTES = 4 * 1024 * 1024
# Explicit scoped-VMEM limit so the 16 MiB footprint is legal on v5e
# (16 MiB default) and comfortably within v6e/v7x scoped defaults.
_VMEM_LIMIT_BYTES = 32 * 1024 * 1024
_LANE_CANDIDATES = (2048, 1024, 512, 256, 128)


def _new_gelu_kernel(x_ref, o_ref, *, compute_dtype):
    # Note: the ragged last grid block may read garbage rows; tanh of garbage
    # is benign on TPU (no float traps) and out-of-bounds writes are masked.
    x = x_ref[...].astype(compute_dtype)
    # Folded-constant form of sqrt(2/pi) * (x + 0.044715 * x^3).
    inner = x * (_C1 + _C2 * (x * x))
    y = 0.5 * x * (1.0 + jnp.tanh(inner))
    o_ref[...] = y.astype(o_ref.dtype)


def _jnp_new_gelu(x: jax.Array) -> jax.Array:
    # Rare-path fallback (element count not a multiple of 128): plain XLA is
    # cheaper than a pad + slice round trip around the Pallas kernel.
    dt = jnp.dtype(x.dtype)
    cdt = dt if dt == jnp.dtype(jnp.bfloat16) or dt == jnp.dtype(jnp.float32) \
        else jnp.float32
    xf = x.astype(cdt)
    y = 0.5 * xf * (1.0 + jnp.tanh(xf * (_C1 + _C2 * (xf * xf))))
    return y.astype(x.dtype)


def new_gelu(x: jax.Array) -> jax.Array:
    orig_shape = x.shape
    orig_dtype = x.dtype
    n = x.size
    if n == 0:
        return x

    # Widest lane dim that divides n -> bitcast-only reshape, no padding.
    lanes = None
    for cand in _LANE_CANDIDATES:
        if n % cand == 0:
            lanes = cand
            break
    if lanes is None:
        return _jnp_new_gelu(x)

    x2d = x.reshape(-1, lanes)      # [rows, lanes]; lanes -> TPU lane axis
    rows = x2d.shape[0]
    dsize = jnp.dtype(orig_dtype).itemsize

    # bf16-native math on bf16 inputs; everything else in f32.
    dt = jnp.dtype(orig_dtype)
    compute_dtype = jnp.bfloat16 if dt == jnp.dtype(jnp.bfloat16) else jnp.float32

    # Sublane alignment for the block row count (f32:8, bf16:16, int8/fp8:32).
    sub = max(8, 32 // max(dsize, 1))

    target_rows = max(_TARGET_BLOCK_BYTES // (lanes * dsize), 1)
    rows_per_tile = max((target_rows // sub) * sub, sub)
    if rows_per_tile >= rows:
        # Whole tensor fits in one block: split into >=2 aligned tiles when
        # legal so the parallel grid axis engages both v7x TensorCores.
        half = ((rows // 2) // sub) * sub
        if half >= sub:
            rows_per_tile = half
        else:
            rows_per_tile = rows    # full-extent block is always legal

    grid = (pl.cdiv(rows, rows_per_tile),)

    cost = pl.CostEstimate(
        flops=7 * n,                # ~7 VPU ops per element
        transcendentals=n,          # one tanh per element (EUP)
        bytes_accessed=2 * n * dsize,
    )

    kernel = functools.partial(_new_gelu_kernel, compute_dtype=compute_dtype)

    out2d = pl.pallas_call(
        kernel,
        out_shape=jax.ShapeDtypeStruct((rows, lanes), orig_dtype),
        grid_spec=pltpu.PrefetchScalarGridSpec(
            num_scalar_prefetch=0,
            grid=grid,
            in_specs=[pl.BlockSpec((rows_per_tile, lanes), lambda i: (i, 0))],
            out_specs=pl.BlockSpec((rows_per_tile, lanes), lambda i: (i, 0)),
        ),
        compiler_params=pltpu.CompilerParams(
            dimension_semantics=("parallel",),
            vmem_limit_bytes=_VMEM_LIMIT_BYTES,
        ),
        cost_estimate=cost,
    )(x2d)

    return out2d.reshape(orig_shape)


def _reference_new_gelu_f32(x: jax.Array) -> jax.Array:
    xf = x.astype(jnp.float32)
    return 0.5 * xf * (1.0 + jnp.tanh(
        _SQRT_2_OVER_PI * (xf + 0.044715 * jnp.power(xf, 3.0))))


if __name__ == "__main__":
    key = jax.random.PRNGKey(0)

    # Primary test: small ViT-MLP-like activation (batch=2, seq=8, hidden=32).
    x = jax.random.normal(key, (2, 8, 32), dtype=jnp.float32)
    out = new_gelu(x)
    jax.block_until_ready(out)
    ref = _reference_new_gelu_f32(x)
    assert out.shape == x.shape and out.dtype == x.dtype
    assert jnp.allclose(out.astype(jnp.float32), ref, atol=1e-5, rtol=1e-5)

    k1, k2, k3 = jax.random.split(key, 3)

    # Tiled path: shape divisible by a wide lane width, multiple grid steps.
    x2 = jax.random.normal(k1, (4, 128, 768), dtype=jnp.float32)
    out2 = new_gelu(x2)
    jax.block_until_ready(out2)
    assert jnp.allclose(out2.astype(jnp.float32), _reference_new_gelu_f32(x2),
                        atol=1e-5, rtol=1e-5)

    # bf16 path: native bf16 compute (looser tolerance vs f32 reference).
    x3 = jax.random.normal(k2, (2, 16, 384), dtype=jnp.bfloat16)
    out3 = new_gelu(x3)
    jax.block_until_ready(out3)
    assert out3.dtype == jnp.bfloat16
    assert jnp.allclose(out3.astype(jnp.float32), _reference_new_gelu_f32(x3),
                        atol=5e-2, rtol=5e-2)

    # Ragged path: element count not a multiple of 128 (pure-XLA fallback).
    x4 = jax.random.normal(k3, (3, 7, 5), dtype=jnp.float32)
    out4 = new_gelu(x4)
    jax.block_until_ready(out4)
    assert out4.shape == x4.shape
    assert jnp.allclose(out4.astype(jnp.float32), _reference_new_gelu_f32(x4),
                        atol=1e-5, rtol=1e-5)

    print("KERNEL_OK")
</pallas_src>

<mosaic_0001>
module attributes {stable_mosaic.version = 11 : i64} {
  func.func @_new_gelu_kernel(%arg0: i32, %arg1: memref<1x512xf32, #tpu.memory_space<vmem>>, %arg2: memref<1x512xf32, #tpu.memory_space<vmem>>) attributes {dimension_semantics = [#tpu.dimension_semantics<parallel>], iteration_bounds = array<i64: 1>, scalar_prefetch = 0 : i64, scratch_operands = 0 : i64, tpu.core_type = #tpu.core_type<tc>, window_params = [{transform_indices = @transform_0, window_bounds = array<i64: 1, 512>}, {transform_indices = @transform_1, window_bounds = array<i64: 1, 512>}]} {
    %c0 = arith.constant 0 : index
    %c0_0 = arith.constant 0 : index
    %0 = vector.load %arg1[%c0, %c0_0] : memref<1x512xf32, #tpu.memory_space<vmem>>, vector<1x512xf32>
    %1 = arith.mulf %0, %0 : vector<1x512xf32>
    %cst = arith.constant 0.0356774069 : f32
    %2 = vector.broadcast %cst : f32 to vector<1x512xf32>
    %3 = arith.mulf %2, %1 : vector<1x512xf32>
    %cst_1 = arith.constant 0.797884583 : f32
    %4 = vector.broadcast %cst_1 : f32 to vector<1x512xf32>
    %5 = arith.addf %4, %3 : vector<1x512xf32>
    %6 = arith.mulf %0, %5 : vector<1x512xf32>
    %cst_2 = arith.constant 5.000000e-01 : f32
    %7 = vector.broadcast %cst_2 : f32 to vector<1x512xf32>
    %8 = arith.mulf %7, %0 : vector<1x512xf32>
    %9 = math.tanh %6 : vector<1x512xf32>
    %cst_3 = arith.constant 1.000000e+00 : f32
    %10 = vector.broadcast %cst_3 : f32 to vector<1x512xf32>
    %11 = arith.addf %10, %9 : vector<1x512xf32>
    %12 = arith.mulf %8, %11 : vector<1x512xf32>
    %c0_4 = arith.constant 0 : index
    %c0_5 = arith.constant 0 : index
    %13 = vector.load %arg2[%c0_4, %c0_5] : memref<1x512xf32, #tpu.memory_space<vmem>>, vector<1x512xf32>
    tpu.vector_store %arg2[%c0_4, %c0_5], %12 {strides = array<i32>} : memref<1x512xf32, #tpu.memory_space<vmem>>, vector<1x512xf32>,
    return
  }
  func.func @transform_0(%arg0: i32) -> (i32, i32) {
    %c0_i32 = arith.constant 0 : i32
    %c0_i32_0 = arith.constant 0 : i32
    return %arg0, %c0_i32 : i32, i32
  }
  func.func @transform_1(%arg0: i32) -> (i32, i32) {
    %c0_i32 = arith.constant 0 : i32
    %c0_i32_0 = arith.constant 0 : i32
    return %arg0, %c0_i32 : i32, i32
  }
}

</mosaic_0001>

<llo_original>
// kernel: tpu_custom_call.1
$region0: #{tpu_custom_call.1}
  #allocation0 [shape = 'u32[]', space=smem, size = 0x4, offset = 0x4, fixed_abs, tag = 'smem constant byte address 0x4 - core index']
  #allocation1 [shape = 'u32[72,128]{1,0:T(1,128)}', space=vmem, size = 0x9000, scoped, tag = 'internal scratch']
  %s0 = inlined_call_operand.hbm [shape: f32[1,512], index: 0, kind: input, shape index: {}]
  %s1 = inlined_call_operand.hbm [shape: f32[1,512], index: 1, kind: output, shape index: {}]
  %s2 = sld [smem:[#allocation0]]
  $region18: #{tpu_custom_call.1} parent=0
    _
  %s4 = ssub.s32 1, %s2
  %s5 = scalar_select 0, %s4, %s2
  $region1: #{tpu_custom_call.1} parent=0
    #allocation2 [shape = 'u8[2048]{0}', space=vmem, size = 0x800, scoped, tag = 'input window, operand 0, single buffered']
    #allocation3 [shape = 's32[1]{0}', space=sflag, size = 0x4, scoped, tag = 'scoped memory for tpu_custom_call.1']
    #allocation4 [shape = 's32[1]{0}', space=sflag, size = 0x4, scoped, tag = 'scoped memory for tpu_custom_call.1']
    #allocation5 [shape = 'u8[2048]{0}', space=vmem, size = 0x800, scoped, tag = 'output window, operand 0, single buffered']
    %6 = vsyncpa [#allocation3], 0
    %7 = vsyncpa [#allocation4], 0
    // Predicated region
    $region2: #{tpu_custom_call.1} parent=1 // pred_check
      _
    $region3: #{tpu_custom_call.1} parent=1 // pred_check_branch
      %9 = sbr.rel (0) target = $region5
    $region4: #{tpu_custom_call.1} parent=1 // pred_region
      %11 = vsyncadd [#allocation3], 0
      %s13 = sshll.u32 %s0, 4
      %s14 = int_to_ptr.hbm [resolvable:$true] %s13
      %s15 = sshll.u32 [#allocation2], 4
      %s16 = int_to_ptr.vmem [resolvable:$true] %s15
      %18 = dma.hbm_to_vmem [thread:$0]  %s14, 64, %s16, [#allocation3]
    $region5: #{tpu_custom_call.1} parent=1 // pred_fallthru
      _
    // Predicated region
    $region6: #{tpu_custom_call.1} parent=1 // pred_check
      _
    $region7: #{tpu_custom_call.1} parent=1 // pred_check_branch
      %20 = sbr.rel (0) target = $region9
    $region8: #{tpu_custom_call.1} parent=1 // pred_region
      %22 = dma.done [#allocation3], 64
    $region9: #{tpu_custom_call.1} parent=1 // pred_fallthru
      _
    %v23 = vld [vmem:[#allocation2] sm:$0xf]
    %v24 = vmul.f32 %v23, %v23
    %v25 = vmul.f32 %v24, 0.035677407
    %v26 = vadd.f32 %v25, 0.7978846
    %v27 = vmul.f32 %v23, %v26
    %v28 = vmul.f32 %v23, 0.5
    %v29 = vtanh.pop %v27
    %v30 = vadd.f32 %v29, 1.0
    %v31 = vmul.f32 %v28, %v30
    %v32 = vlaneseq
    %vm33 = vcmp.ge.s32.totalorder %v32, 0
    %vm34 = vcmp.lt.s32.totalorder %v32, 512
    %vm35 = vmand %vm33, %vm34
    %36 = vst.msk [vmem:[#allocation5] sm:$0xf] %vm35, %v31
    // Predicated region
    $region10: #{tpu_custom_call.1} parent=1 // pred_check
      _
    $region11: #{tpu_custom_call.1} parent=1 // pred_check_branch
      %38 = sbr.rel (0) target = $region13
    $region12: #{tpu_custom_call.1} parent=1 // pred_region
      %40 = vsyncadd [#allocation4], 0
      %s42 = sshll.u32 [#allocation5], 4
      %s43 = int_to_ptr.vmem [resolvable:$true] %s42
      %s44 = sshll.u32 %s1, 4
      %s45 = int_to_ptr.hbm [resolvable:$true] %s44
      %47 = dma.vmem_to_hbm [thread:$0]  %s43, 64, %s45, [#allocation4]
    $region13: #{tpu_custom_call.1} parent=1 // pred_fallthru
      _
    // Predicated region
    $region14: #{tpu_custom_call.1} parent=1 // pred_check
      _
    $region15: #{tpu_custom_call.1} parent=1 // pred_check_branch
      %49 = sbr.rel (0) target = $region17
    $region16: #{tpu_custom_call.1} parent=1 // pred_region
      %51 = dma.done [#allocation4], 64
    $region17: #{tpu_custom_call.1} parent=1 // pred_fallthru
      _
    %52 = vsyncpa [#allocation3], 1
    %53 = vsyncpa [#allocation4], 1

</llo_original>
